<compile_context>
chip_gen: v7x
topology: tpu7x:2x2x1
jax: 0.10.0
libtpu: 0.0.40
codegen_flags: <defaults>
</compile_context>

<pallas_src>
import math

import jax
import jax.numpy as jnp
from jax.experimental import pallas as pl
from jax.experimental.pallas import tpu as pltpu


def _round_up(x, m):
    return ((x + m - 1) // m) * m


def irt_kernel(theta_ref, alpha_ref, beta_ref, out_ref):
    # theta_ref / alpha_ref: (D, TB) f32 slabs, batch on lanes.
    # beta_ref / out_ref:    (1, TB) f32 slabs (lane-dense).
    prod = alpha_ref[...] * theta_ref[...]                          # VPU, (D, TB)
    logit = jnp.sum(prod, axis=0, keepdims=True) + beta_ref[...]    # XLU reduce, (1, TB)
    out_ref[...] = jax.nn.sigmoid(logit)                            # EUP


def irt_forward(student_ids, question_ids, theta_w, alpha_w, beta_w,
                *, batch_tile=512):
    """pred = sigmoid(sum(alpha[q] * theta[s], dim=1, keepdim=True) + beta[q])."""
    B = student_ids.shape[0]
    D = theta_w.shape[1]

    # Lane-dense batch tiling: TB is a multiple of 128; b_pad a multiple of TB.
    tb = min(batch_tile, _round_up(B, 128))
    b_pad = _round_up(B, tb)

    # Pad ids (index 0 is always valid); padded lanes are dropped at the end.
    sid = jnp.pad(student_ids, (0, b_pad - B))
    qid = jnp.pad(question_ids, (0, b_pad - B))

    # Embedding gather + transpose in the wrapper (free layout plumbing):
    # batch goes on the lane axis so the kernel is fully vectorized.
    theta_t = jnp.take(theta_w, sid, axis=0).T    # (D, b_pad)
    alpha_t = jnp.take(alpha_w, qid, axis=0).T    # (D, b_pad)
    beta_t = jnp.take(beta_w, qid, axis=0).T      # (1, b_pad)

    grid = (b_pad // tb,)

    out = pl.pallas_call(
        irt_kernel,
        out_shape=jax.ShapeDtypeStruct((1, b_pad), jnp.float32),
        grid=grid,
        in_specs=[
            pl.BlockSpec((D, tb), lambda i: (0, i)),   # theta slab
            pl.BlockSpec((D, tb), lambda i: (0, i)),   # alpha slab
            pl.BlockSpec((1, tb), lambda i: (0, i)),   # beta slab
        ],
        out_specs=pl.BlockSpec((1, tb), lambda i: (0, i)),
        compiler_params=pltpu.CompilerParams(
            dimension_semantics=("parallel",)),
        cost_estimate=pl.CostEstimate(
            flops=2 * b_pad * D,
            transcendentals=b_pad,
            bytes_accessed=(2 * D + 2) * b_pad * 4),
    )(theta_t, alpha_t, beta_t)

    # Drop padding lanes and restore PyTorch's (B, 1) output shape.
    return out[0, :B].reshape(B, 1)


def xavier_normal(key, shape):
    # PyTorch xavier_normal_ on a 2-D weight (out, in): std = sqrt(2/(fan_in+fan_out))
    fan_out, fan_in = shape
    std = math.sqrt(2.0 / (fan_in + fan_out))
    return std * jax.random.normal(key, shape, dtype=jnp.float32)


if __name__ == "__main__":
    num_students, num_questions, num_dim = 20, 30, 32
    batch = 8

    key = jax.random.PRNGKey(0)
    k_theta, k_alpha, k_beta, k_s, k_q = jax.random.split(key, 5)

    # Deterministic parameter init (xavier_normal, matching module __init__ shapes)
    theta_w = xavier_normal(k_theta, (num_students, num_dim))
    alpha_w = xavier_normal(k_alpha, (num_questions, num_dim))
    beta_w = xavier_normal(k_beta, (num_questions, 1))

    student_ids = jax.random.randint(k_s, (batch,), 0, num_students, dtype=jnp.int32)
    question_ids = jax.random.randint(k_q, (batch,), 0, num_questions, dtype=jnp.int32)

    pred = irt_forward(student_ids, question_ids, theta_w, alpha_w, beta_w)
    pred = jax.block_until_ready(pred)

    # Pure-JAX reference for a silent sanity check.
    theta = theta_w[student_ids]
    alpha = alpha_w[question_ids]
    beta = beta_w[question_ids]
    ref = jax.nn.sigmoid(jnp.sum(alpha * theta, axis=1, keepdims=True) + beta)
    assert pred.shape == (batch, 1)
    assert jnp.allclose(pred, ref, atol=1e-5, rtol=1e-5)

    print("KERNEL_OK")
</pallas_src>

<mosaic_0001>
module attributes {stable_mosaic.version = 11 : i64} {
  func.func @irt_kernel(%arg0: i32, %arg1: memref<32x128xf32, #tpu.memory_space<vmem>>, %arg2: memref<32x128xf32, #tpu.memory_space<vmem>>, %arg3: memref<1x128xf32, #tpu.memory_space<vmem>>, %arg4: memref<1x128xf32, #tpu.memory_space<vmem>>) attributes {dimension_semantics = [#tpu.dimension_semantics<parallel>], iteration_bounds = array<i64: 1>, scalar_prefetch = 0 : i64, scratch_operands = 0 : i64, tpu.core_type = #tpu.core_type<tc>, window_params = [{transform_indices = @transform_0, window_bounds = array<i64: 32, 128>}, {transform_indices = @transform_1, window_bounds = array<i64: 32, 128>}, {transform_indices = @transform_2, window_bounds = array<i64: 1, 128>}, {transform_indices = @transform_3, window_bounds = array<i64: 1, 128>}]} {
    %c0 = arith.constant 0 : index
    %c0_0 = arith.constant 0 : index
    %0 = vector.load %arg2[%c0, %c0_0] : memref<32x128xf32, #tpu.memory_space<vmem>>, vector<32x128xf32>
    %c0_1 = arith.constant 0 : index
    %c0_2 = arith.constant 0 : index
    %1 = vector.load %arg1[%c0_1, %c0_2] : memref<32x128xf32, #tpu.memory_space<vmem>>, vector<32x128xf32>
    %2 = arith.mulf %0, %1 : vector<32x128xf32>
    %cst = arith.constant dense<0.000000e+00> : vector<128xf32>
    %3 = vector.multi_reduction <add>, %2, %cst [0] : vector<32x128xf32> to vector<128xf32>
    %4 = vector.shape_cast %3 : vector<128xf32> to vector<1x128xf32>
    %c0_3 = arith.constant 0 : index
    %c0_4 = arith.constant 0 : index
    %5 = vector.load %arg3[%c0_3, %c0_4] : memref<1x128xf32, #tpu.memory_space<vmem>>, vector<1x128xf32>
    %6 = arith.addf %4, %5 : vector<1x128xf32>
    %7 = arith.negf %6 : vector<1x128xf32>
    %8 = math.exp %7 : vector<1x128xf32>
    %cst_5 = arith.constant 1.000000e+00 : f32
    %9 = vector.broadcast %cst_5 : f32 to vector<1x128xf32>
    %10 = arith.addf %9, %8 : vector<1x128xf32>
    %11 = arith.divf %9, %10 : vector<1x128xf32>
    %c0_6 = arith.constant 0 : index
    %c0_7 = arith.constant 0 : index
    %12 = vector.load %arg4[%c0_6, %c0_7] : memref<1x128xf32, #tpu.memory_space<vmem>>, vector<1x128xf32>
    tpu.vector_store %arg4[%c0_6, %c0_7], %11 {strides = array<i32>} : memref<1x128xf32, #tpu.memory_space<vmem>>, vector<1x128xf32>,
    return
  }
  func.func @transform_0(%arg0: i32) -> (i32, i32) {
    %c0_i32 = arith.constant 0 : i32
    %c0_i32_0 = arith.constant 0 : i32
    return %c0_i32, %arg0 : i32, i32
  }
  func.func @transform_1(%arg0: i32) -> (i32, i32) {
    %c0_i32 = arith.constant 0 : i32
    %c0_i32_0 = arith.constant 0 : i32
    return %c0_i32, %arg0 : i32, i32
  }
  func.func @transform_2(%arg0: i32) -> (i32, i32) {
    %c0_i32 = arith.constant 0 : i32
    %c0_i32_0 = arith.constant 0 : i32
    return %c0_i32, %arg0 : i32, i32
  }
  func.func @transform_3(%arg0: i32) -> (i32, i32) {
    %c0_i32 = arith.constant 0 : i32
    %c0_i32_0 = arith.constant 0 : i32
    return %c0_i32, %arg0 : i32, i32
  }
}

</mosaic_0001>

<llo_original>
// kernel: tpu_custom_call.1
$region0: #{tpu_custom_call.1}
  #allocation0 [shape = 'u32[]', space=smem, size = 0x4, offset = 0x4, fixed_abs, tag = 'smem constant byte address 0x4 - core index']
  #allocation1 [shape = 'u32[144,128]{1,0:T(1,128)}', space=vmem, size = 0x12000, scoped, tag = 'internal scratch']
  %s0 = inlined_call_operand.hbm [shape: f32[32,128], index: 0, kind: input, shape index: {}]
  %s1 = inlined_call_operand.hbm [shape: f32[32,128], index: 1, kind: input, shape index: {}]
  %s2 = inlined_call_operand.vmem [shape: f32[1,128], index: 2, kind: input, shape index: {}]
  %s3 = inlined_call_operand.hbm [shape: f32[1,128], index: 3, kind: output, shape index: {}]
  %s4 = sld [smem:[#allocation0]]
  $region30: #{tpu_custom_call.1} parent=0
    _
  %s6 = ssub.s32 1, %s4
  %s7 = scalar_select 0, %s6, %s4
  $region1: #{tpu_custom_call.1} parent=0
    #allocation2 [shape = 'u8[16384]{0}', space=vmem, size = 0x4000, scoped, tag = 'input window, operand 0, single buffered']
    #allocation3 [shape = 's32[1]{0}', space=sflag, size = 0x4, scoped, tag = 'scoped memory for tpu_custom_call.1']
    #allocation4 [shape = 's32[1]{0}', space=sflag, size = 0x4, scoped, tag = 'scoped memory for tpu_custom_call.1']
    #allocation5 [shape = 'u8[16384]{0}', space=vmem, size = 0x4000, scoped, tag = 'input window, operand 1, single buffered']
    #allocation6 [shape = 's32[1]{0}', space=sflag, size = 0x4, scoped, tag = 'scoped memory for tpu_custom_call.1']
    #allocation7 [shape = 'u8[512]{0}', space=vmem, size = 0x400, scoped, tag = 'output window, operand 0, single buffered']
    %8 = vsyncpa [#allocation3], 0
    %9 = vsyncpa [#allocation6], 0
    %10 = vsyncpa [#allocation4], 0
    // Predicated region
    $region2: #{tpu_custom_call.1} parent=1 // pred_check
      _
    $region3: #{tpu_custom_call.1} parent=1 // pred_check_branch
      %12 = sbr.rel (0) target = $region5
    $region4: #{tpu_custom_call.1} parent=1 // pred_region
      %s14 = ssub.s32 512, 512
      %15 = vsyncadd [#allocation3], %s14
      %s16 = sshll.u32 [#allocation2], 4
      %s17 = int_to_ptr.vmem [resolvable:$true] %s16
      %22 = dma.hbm_to_vmem [thread:$0]  %s0, 512, %s17, [#allocation3], 128, 128, 8
    $region5: #{tpu_custom_call.1} parent=1 // pred_fallthru
      _
    // Predicated region
    $region6: #{tpu_custom_call.1} parent=1 // pred_check
      _
    $region7: #{tpu_custom_call.1} parent=1 // pred_check_branch
      %24 = sbr.rel (0) target = $region9
    $region8: #{tpu_custom_call.1} parent=1 // pred_region
      %s26 = ssub.s32 512, 512
      %27 = vsyncadd [#allocation6], %s26
      %s28 = sshll.u32 [#allocation5], 4
      %s29 = int_to_ptr.vmem [resolvable:$true] %s28
      %34 = dma.hbm_to_vmem [thread:$0]  %s1, 512, %s29, [#allocation6], 128, 128, 8
    $region9: #{tpu_custom_call.1} parent=1 // pred_fallthru
      _
    // Predicated region
    $region10: #{tpu_custom_call.1} parent=1 // pred_check
      _
    $region11: #{tpu_custom_call.1} parent=1 // pred_check_branch
      %36 = sbr.rel (0) target = $region13
    $region12: #{tpu_custom_call.1} parent=1 // pred_region
      _
    $region13: #{tpu_custom_call.1} parent=1 // pred_fallthru
      _
    // Predicated region
    $region14: #{tpu_custom_call.1} parent=1 // pred_check
      _
    $region15: #{tpu_custom_call.1} parent=1 // pred_check_branch
      %38 = sbr.rel (0) target = $region17
    $region16: #{tpu_custom_call.1} parent=1 // pred_region
      %39 = dma.done [#allocation3], 512
    $region17: #{tpu_custom_call.1} parent=1 // pred_fallthru
      _
    // Predicated region
    $region18: #{tpu_custom_call.1} parent=1 // pred_check
      _
    $region19: #{tpu_custom_call.1} parent=1 // pred_check_branch
      %41 = sbr.rel (0) target = $region21
    $region20: #{tpu_custom_call.1} parent=1 // pred_region
      %42 = dma.done [#allocation6], 512
    $region21: #{tpu_custom_call.1} parent=1 // pred_fallthru
      _
    %v43 = vld [vmem:[#allocation5] sm:$0xff]
    %v44 = vld [vmem:[#allocation5 + $0x8] sm:$0xff]
    %v45 = vld [vmem:[#allocation5 + $0x10] sm:$0xff]
    %v46 = vld [vmem:[#allocation5 + $0x18] sm:$0xff]
    %v47 = vld [vmem:[#allocation2] sm:$0xff]
    %v48 = vld [vmem:[#allocation2 + $0x8] sm:$0xff]
    %v49 = vld [vmem:[#allocation2 + $0x10] sm:$0xff]
    %v50 = vld [vmem:[#allocation2 + $0x18] sm:$0xff]
    %v51 = vmul.f32 %v43, %v47
    %v52 = vmul.f32 %v44, %v48
    %v53 = vmul.f32 %v45, %v49
    %v54 = vmul.f32 %v46, %v50
    %v55 = vadd.f32 %v51, %v52
    %v56 = vadd.f32 %v55, %v53
    %v57 = vadd.f32 %v56, %v54
    %v58 = vrot.slane %v57, 4
    %v59 = vadd.f32 %v57, %v58
    %v60 = vrot.slane %v59, 2
    %v61 = vadd.f32 %v59, %v60
    %v62 = vrot.slane %v61, 1
    %v63 = vadd.f32 %v61, %v62
    %v64 = vld [vmem:[%s2] sm:$0x1]
    %v65 = vadd.f32 %v63, %v64
    %v66 = vxor.u32 %v65, 2147483648
    %v67 = vmul.f32 %v66, 1.442695
    %v68 = vpow.pop %v67
    %v69 = vadd.f32 %v68, 1.0
    %v70 = vrcp.pop %v69
    %v71 = vmul.f32 1.0, %v70
    %72 = vst [vmem:[#allocation7] sm:$0x1] %v71
    // Predicated region
    $region22: #{tpu_custom_call.1} parent=1 // pred_check
      _
    $region23: #{tpu_custom_call.1} parent=1 // pred_check_branch
      %74 = sbr.rel (0) target = $region25
    $region24: #{tpu_custom_call.1} parent=1 // pred_region
      %s76 = ssub.s32 16, 16
      %77 = vsyncadd [#allocation4], %s76
      %s79 = sshll.u32 [#allocation7], 4
      %s80 = int_to_ptr.vmem [resolvable:$true] %s79
      %82 = dma.vmem_to_hbm [thread:$0]  %s80, 16, %s3, [#allocation4]
    $region25: #{tpu_custom_call.1} parent=1 // pred_fallthru
      _
    // Predicated region
    $region26: #{tpu_custom_call.1} parent=1 // pred_check
      _
    $region27: #{tpu_custom_call.1} parent=1 // pred_check_branch
      %84 = sbr.rel (0) target = $region29
    $region28: #{tpu_custom_call.1} parent=1 // pred_region
      %85 = dma.done [#allocation4], 16
    $region29: #{tpu_custom_call.1} parent=1 // pred_fallthru
      _
    %86 = vsyncpa [#allocation3], 1
    %87 = vsyncpa [#allocation6], 1
    %88 = vsyncpa [#allocation4], 1

</llo_original>
